<compile_context>
chip_gen: v5e
topology: v5e:2x2
jax: 0.10.0
libtpu: 0.0.40
codegen_flags: <defaults>
</compile_context>

<pallas_src>
import functools

import numpy as np
import jax
import jax.numpy as jnp
from jax.experimental import pallas as pl
from jax.experimental.pallas import tpu as pltpu

LANE = 128  # lane width; all packed slabs use this as the last dim.


def _round_up(x, m):
    return ((x + m - 1) // m) * m


def policy_kernel(h_ref, w_ref, b_ref, out_ref, *, S, SP, P):
    """Fused forward: 3 matmuls, biases/ReLU on VPU, one lane-dense store."""
    h = h_ref[...]                                            # (TB, S)

    # h1 = relu(lin_hidden(h))   (padded cols stay exactly 0)
    w1 = w_ref[0:S, :]                                        # (S, P)
    h1 = jnp.dot(h, w1, preferred_element_type=jnp.float32) + b_ref[0:1, :]
    h1 = jnp.maximum(h1, 0.0)                                 # (TB, P)

    # fused branches: cols [0:H] = relu(lin_policy), [H:2H] = relu(lin_value)
    w2 = w_ref[SP:SP + P, :]                                  # (P, P)
    z = jnp.dot(h1, w2, preferred_element_type=jnp.float32) + b_ref[1:2, :]
    z = jnp.maximum(z, 0.0)                                   # (TB, P)

    # fused heads (block-diagonal): cols [0:A] = logits, col A = value
    w3 = w_ref[SP + P:SP + 2 * P, :]                          # (P, P)
    out = jnp.dot(z, w3, preferred_element_type=jnp.float32) + b_ref[2:3, :]
    out_ref[...] = out                                        # (TB, P)


def pack_params(p):
    """Pack the 10 Linear params into one weight slab and one bias slab."""
    S, H = p["w_hid"].shape
    A = p["w_pi"].shape[1]
    SP = _round_up(S, 8)
    P = LANE
    assert 2 * H <= P and (A + 1) <= P, "hidden_size/action dims exceed lane padding"

    def pad_to(x, rows, cols):
        return jnp.zeros((rows, cols), jnp.float32).at[:x.shape[0], :x.shape[1]].set(x)

    # Block 1: lin_hidden weight, rows padded to SP.
    w1 = pad_to(p["w_hid"], SP, P)
    # Block 2: fused branch weight [w_pol | w_val] -> (H, 2H), padded to (P, P).
    w_branch = jnp.concatenate([p["w_pol"], p["w_val"]], axis=1)
    w2 = pad_to(w_branch, P, P)
    # Block 3: fused head weight, block-diagonal (2H, A+1), padded to (P, P).
    w3 = jnp.zeros((P, P), jnp.float32)
    w3 = w3.at[0:H, 0:A].set(p["w_pi"])
    w3 = w3.at[H:2 * H, A:A + 1].set(p["w_v"])

    w_slab = jnp.concatenate([w1, w2, w3], axis=0)            # (SP + 2P, P)

    b1 = pad_to(p["b_hid"], 1, P)
    b2 = pad_to(jnp.concatenate([p["b_pol"], p["b_val"]], axis=1), 1, P)
    b3 = jnp.zeros((1, P), jnp.float32)
    b3 = b3.at[0, 0:A].set(p["b_pi"][0]).at[0, A].set(p["b_v"][0, 0])
    b_slab = jnp.concatenate(
        [b1, b2, b3, jnp.zeros((5, P), jnp.float32)], axis=0)  # (8, P)

    meta = dict(S=S, SP=SP, H=H, A=A, P=P)
    return w_slab, b_slab, meta


def policy_forward(h, w_slab, b_slab, meta):
    """Returns (logits, value) matching Policy.forward.

    Categorical(logits=...) is just a wrapper around the logits, so the raw
    logits are returned; value is flattened to (-1,)."""
    S, SP, A, P = meta["S"], meta["SP"], meta["A"], meta["P"]
    B = h.shape[0]

    # Batch tiling: one big tile if it fits, otherwise 256-row tiles sharded
    # across cores via the "parallel" grid axis (pad B so every tile is full).
    TB = B if B <= 256 else 256
    Bp = _round_up(B, TB)
    if Bp != B:
        h = jnp.pad(h, ((0, Bp - B), (0, 0)))
    grid = (Bp // TB,)

    kernel = functools.partial(policy_kernel, S=S, SP=SP, P=P)

    out = pl.pallas_call(
        kernel,
        out_shape=jax.ShapeDtypeStruct((Bp, P), jnp.float32),
        grid=grid,
        in_specs=[
            pl.BlockSpec((TB, S), lambda i: (i, 0)),            # h tile
            pl.BlockSpec(w_slab.shape, lambda i: (0, 0)),       # weight slab (resident)
            pl.BlockSpec(b_slab.shape, lambda i: (0, 0)),       # bias slab (resident)
        ],
        out_specs=pl.BlockSpec((TB, P), lambda i: (i, 0)),
        compiler_params=pltpu.CompilerParams(
            dimension_semantics=("parallel",)),
    )(h, w_slab, b_slab)

    logits = out[:B, :A]
    value = out[:B, A]
    return logits, value


def orthogonal(key, shape, gain):
    """Deterministic orthogonal init (matches nn.init.orthogonal_ semantics)."""
    rows, cols = shape
    flat = jax.random.normal(key, (max(rows, cols), min(rows, cols)), jnp.float32)
    q, r = jnp.linalg.qr(flat)
    q = q * jnp.sign(jnp.diagonal(r))
    if rows < cols:
        q = q.T
    return gain * q[:rows, :cols]


def make_params(key, hidden_state_size, hidden_size, action_space_shape):
    ks = jax.random.split(key, 10)
    sqrt2 = float(np.sqrt(2.0))
    # PyTorch Linear weight is [out, in]; we store transposed [in, out].
    params = {
        "w_hid": orthogonal(ks[0], (hidden_size, hidden_state_size), sqrt2).T,
        "b_hid": jax.random.uniform(ks[1], (1, hidden_size), jnp.float32, -0.1, 0.1),
        "w_pol": orthogonal(ks[2], (hidden_size, hidden_size), sqrt2).T,
        "b_pol": jax.random.uniform(ks[3], (1, hidden_size), jnp.float32, -0.1, 0.1),
        "w_val": orthogonal(ks[4], (hidden_size, hidden_size), sqrt2).T,
        "b_val": jax.random.uniform(ks[5], (1, hidden_size), jnp.float32, -0.1, 0.1),
        "w_pi": orthogonal(ks[6], (action_space_shape, hidden_size),
                           float(np.sqrt(0.01))).T,
        "b_pi": jax.random.uniform(ks[7], (1, action_space_shape), jnp.float32, -0.1, 0.1),
        "w_v": orthogonal(ks[8], (1, hidden_size), 1.0).T,
        "b_v": jax.random.uniform(ks[9], (1, 1), jnp.float32, -0.1, 0.1),
    }
    return params


def reference_forward(h, p):
    relu = lambda x: jnp.maximum(x, 0.0)
    h1 = relu(h @ p["w_hid"] + p["b_hid"])
    hp = relu(h1 @ p["w_pol"] + p["b_pol"])
    hv = relu(h1 @ p["w_val"] + p["b_val"])
    logits = hp @ p["w_pi"] + p["b_pi"]
    value = (hv @ p["w_v"] + p["b_v"]).reshape(-1)
    return logits, value


if __name__ == "__main__":
    batch = 8
    hidden_state_size = 32
    hidden_size = 32
    action_space_shape = 6

    key = jax.random.PRNGKey(0)
    k_h, k_p = jax.random.split(key)
    h = jax.random.normal(k_h, (batch, hidden_state_size), jnp.float32)
    params = make_params(k_p, hidden_state_size, hidden_size, action_space_shape)
    w_slab, b_slab, meta = pack_params(params)

    logits, value = policy_forward(h, w_slab, b_slab, meta)
    jax.block_until_ready((logits, value))

    ref_logits, ref_value = reference_forward(h, params)
    np.testing.assert_allclose(np.asarray(logits), np.asarray(ref_logits),
                               rtol=1e-5, atol=1e-5)
    np.testing.assert_allclose(np.asarray(value), np.asarray(ref_value),
                               rtol=1e-5, atol=1e-5)

    assert logits.shape == (batch, action_space_shape)
    assert value.shape == (batch,)
    print("KERNEL_OK")
</pallas_src>

<mosaic_0001>
module attributes {stable_mosaic.version = 11 : i64} {
  func.func @policy_kernel(%arg0: i32, %arg1: memref<8x32xf32, #tpu.memory_space<vmem>>, %arg2: memref<288x128xf32, #tpu.memory_space<vmem>>, %arg3: memref<8x128xf32, #tpu.memory_space<vmem>>, %arg4: memref<8x128xf32, #tpu.memory_space<vmem>>) attributes {dimension_semantics = [#tpu.dimension_semantics<parallel>], iteration_bounds = array<i64: 1>, scalar_prefetch = 0 : i64, scratch_operands = 0 : i64, tpu.core_type = #tpu.core_type<tc>, window_params = [{transform_indices = @transform_0, window_bounds = array<i64: 8, 32>}, {pipeline_mode = #tpu.pipeline_mode<synchronous>, transform_indices = @transform_1, window_bounds = array<i64: 288, 128>}, {pipeline_mode = #tpu.pipeline_mode<synchronous>, transform_indices = @transform_2, window_bounds = array<i64: 8, 128>}, {transform_indices = @transform_3, window_bounds = array<i64: 8, 128>}]} {
    %c0 = arith.constant 0 : index
    %c0_0 = arith.constant 0 : index
    %0 = vector.load %arg1[%c0, %c0_0] : memref<8x32xf32, #tpu.memory_space<vmem>>, vector<8x32xf32>
    %c0_1 = arith.constant 0 : index
    %c0_2 = arith.constant 0 : index
    %1 = vector.load %arg2[%c0_1, %c0_2] : memref<288x128xf32, #tpu.memory_space<vmem>>, vector<32x128xf32>
    %cst = arith.constant dense<0.000000e+00> : vector<8x128xf32>
    %2 = tpu.matmul %0, %1, %cst {dimension_numbers = #tpu.dot_dimension_numbers<[1], [0], [0], [1], [0, 0, 1, 1], [], []>} : vector<8x32xf32>, vector<32x128xf32>, vector<8x128xf32> -> vector<8x128xf32>
    %c0_3 = arith.constant 0 : index
    %c0_4 = arith.constant 0 : index
    %3 = vector.load %arg3[%c0_3, %c0_4] : memref<8x128xf32, #tpu.memory_space<vmem>>, vector<1x128xf32>
    %4 = vector.broadcast %3 : vector<1x128xf32> to vector<8x128xf32>
    %5 = arith.addf %2, %4 : vector<8x128xf32>
    %cst_5 = arith.constant 0.000000e+00 : f32
    %6 = vector.broadcast %cst_5 : f32 to vector<8x128xf32>
    %7 = arith.maximumf %5, %6 : vector<8x128xf32>
    %c32 = arith.constant 32 : index
    %c0_6 = arith.constant 0 : index
    %8 = vector.load %arg2[%c32, %c0_6] : memref<288x128xf32, #tpu.memory_space<vmem>>, vector<128x128xf32>
    %cst_7 = arith.constant dense<0.000000e+00> : vector<8x128xf32>
    %9 = tpu.matmul %7, %8, %cst_7 {dimension_numbers = #tpu.dot_dimension_numbers<[1], [0], [0], [1], [0, 0, 1, 1], [], []>} : vector<8x128xf32>, vector<128x128xf32>, vector<8x128xf32> -> vector<8x128xf32>
    %c1 = arith.constant 1 : index
    %c0_8 = arith.constant 0 : index
    %10 = vector.load %arg3[%c1, %c0_8] : memref<8x128xf32, #tpu.memory_space<vmem>>, vector<1x128xf32>
    %11 = vector.broadcast %10 : vector<1x128xf32> to vector<8x128xf32>
    %12 = arith.addf %9, %11 : vector<8x128xf32>
    %cst_9 = arith.constant 0.000000e+00 : f32
    %13 = vector.broadcast %cst_9 : f32 to vector<8x128xf32>
    %14 = arith.maximumf %12, %13 : vector<8x128xf32>
    %c160 = arith.constant 160 : index
    %c0_10 = arith.constant 0 : index
    %15 = vector.load %arg2[%c160, %c0_10] : memref<288x128xf32, #tpu.memory_space<vmem>>, vector<128x128xf32>
    %cst_11 = arith.constant dense<0.000000e+00> : vector<8x128xf32>
    %16 = tpu.matmul %14, %15, %cst_11 {dimension_numbers = #tpu.dot_dimension_numbers<[1], [0], [0], [1], [0, 0, 1, 1], [], []>} : vector<8x128xf32>, vector<128x128xf32>, vector<8x128xf32> -> vector<8x128xf32>
    %c2 = arith.constant 2 : index
    %c0_12 = arith.constant 0 : index
    %17 = vector.load %arg3[%c2, %c0_12] : memref<8x128xf32, #tpu.memory_space<vmem>>, vector<1x128xf32>
    %18 = vector.broadcast %17 : vector<1x128xf32> to vector<8x128xf32>
    %19 = arith.addf %16, %18 : vector<8x128xf32>
    %c0_13 = arith.constant 0 : index
    %c0_14 = arith.constant 0 : index
    %20 = vector.load %arg4[%c0_13, %c0_14] : memref<8x128xf32, #tpu.memory_space<vmem>>, vector<8x128xf32>
    tpu.vector_store %arg4[%c0_13, %c0_14], %19 {strides = array<i32>} : memref<8x128xf32, #tpu.memory_space<vmem>>, vector<8x128xf32>,
    return
  }
  func.func @transform_0(%arg0: i32) -> (i32, i32) {
    %c0_i32 = arith.constant 0 : i32
    %c0_i32_0 = arith.constant 0 : i32
    return %arg0, %c0_i32 : i32, i32
  }
  func.func @transform_1(%arg0: i32) -> (i32, i32) {
    %c0_i32 = arith.constant 0 : i32
    %c0_i32_0 = arith.constant 0 : i32
    %c0_i32_1 = arith.constant 0 : i32
    return %c0_i32, %c0_i32_0 : i32, i32
  }
  func.func @transform_2(%arg0: i32) -> (i32, i32) {
    %c0_i32 = arith.constant 0 : i32
    %c0_i32_0 = arith.constant 0 : i32
    %c0_i32_1 = arith.constant 0 : i32
    return %c0_i32, %c0_i32_0 : i32, i32
  }
  func.func @transform_3(%arg0: i32) -> (i32, i32) {
    %c0_i32 = arith.constant 0 : i32
    %c0_i32_0 = arith.constant 0 : i32
    return %arg0, %c0_i32 : i32, i32
  }
}

</mosaic_0001>

<llo_original>
// kernel: tpu_custom_call.1
$region0: #{tpu_custom_call.1}
  #allocation0 [shape = 'u32[]', space=smem, size = 0x4, offset = 0x4, fixed_abs, tag = 'smem constant byte address 0x4 - core index']
  #allocation1 [shape = 'u32[72,128]{1,0:T(1,128)}', space=vmem, size = 0x9000, scoped, tag = 'internal scratch']
  %s0 = inlined_call_operand.hbm [shape: f32[8,32], index: 0, kind: input, shape index: {}]
  %s1 = inlined_call_operand.hbm [shape: f32[288,128], index: 1, kind: input, shape index: {}]
  %s2 = inlined_call_operand.hbm [shape: f32[8,128], index: 2, kind: input, shape index: {}]
  %s3 = inlined_call_operand.hbm [shape: f32[8,128], index: 3, kind: output, shape index: {}]
  %s4 = sld [smem:[#allocation0]]
  $region34: #{tpu_custom_call.1} parent=0
    _
  %s6 = ssub.s32 1, %s4
  %s7 = scalar_select 0, %s6, %s4
  $region1: #{tpu_custom_call.1} parent=0
    #allocation2 [shape = 'u8[4096]{0}', space=vmem, size = 0x1000, scoped, tag = 'input window, operand 0, single buffered']
    #allocation3 [shape = 's32[1]{0}', space=sflag, size = 0x4, scoped, tag = 'scoped memory for tpu_custom_call.1']
    #allocation4 [shape = 's32[1]{0}', space=sflag, size = 0x4, scoped, tag = 'scoped memory for tpu_custom_call.1']
    #allocation5 [shape = 'u8[147456]{0}', space=vmem, size = 0x24000, scoped, tag = 'input window, operand 1, single buffered']
    #allocation6 [shape = 's32[1]{0}', space=sflag, size = 0x4, scoped, tag = 'scoped memory for tpu_custom_call.1']
    #allocation7 [shape = 'u8[4096]{0}', space=vmem, size = 0x1000, scoped, tag = 'input window, operand 2, single buffered']
    #allocation8 [shape = 'u8[4096]{0}', space=vmem, size = 0x1000, scoped, tag = 'output window, operand 0, single buffered']
    %8 = vsyncpa [#allocation3], 0
    %9 = vsyncpa [#allocation6], 0
    %10 = vsyncpa [#allocation4], 0
    // Predicated region
    $region2: #{tpu_custom_call.1} parent=1 // pred_check
      _
    $region3: #{tpu_custom_call.1} parent=1 // pred_check_branch
      %12 = sbr.rel (0) target = $region5
    $region4: #{tpu_custom_call.1} parent=1 // pred_region
      %14 = vsyncadd [#allocation3], 0
      %s16 = sshll.u32 %s0, 4
      %s17 = int_to_ptr.hbm [resolvable:$true] %s16
      %s18 = sshll.u32 [#allocation2], 4
      %s19 = int_to_ptr.vmem [resolvable:$true] %s18
      %21 = dma.hbm_to_vmem [thread:$0]  %s17, 128, %s19, [#allocation3]
    $region5: #{tpu_custom_call.1} parent=1 // pred_fallthru
      _
    // Predicated region
    $region6: #{tpu_custom_call.1} parent=1 // pred_check
      _
    $region7: #{tpu_custom_call.1} parent=1 // pred_check_branch
      %23 = sbr.rel (0) target = $region9
    $region8: #{tpu_custom_call.1} parent=1 // pred_region
      %25 = vsyncadd [#allocation6], 0
      %s26 = sshll.u32 %s1, 4
      %s27 = int_to_ptr.hbm [resolvable:$true] %s26
      %s28 = sshll.u32 [#allocation5], 4
      %s29 = int_to_ptr.vmem [resolvable:$true] %s28
      %34 = dma.hbm_to_vmem [thread:$0]  %s27, 4608, %s29, [#allocation6], 128, 128, 8
    $region9: #{tpu_custom_call.1} parent=1 // pred_fallthru
      _
    // Predicated region
    $region10: #{tpu_custom_call.1} parent=1 // pred_check
      _
    $region11: #{tpu_custom_call.1} parent=1 // pred_check_branch
      %36 = sbr.rel (0) target = $region13
    $region12: #{tpu_custom_call.1} parent=1 // pred_region
      %38 = vsyncadd [#allocation6], 0
      %s40 = sshll.u32 %s2, 4
      %s41 = int_to_ptr.hbm [resolvable:$true] %s40
      %s42 = sshll.u32 [#allocation7], 4
      %s43 = int_to_ptr.vmem [resolvable:$true] %s42
      %45 = dma.hbm_to_vmem [thread:$0]  %s41, 128, %s43, [#allocation6]
    $region13: #{tpu_custom_call.1} parent=1 // pred_fallthru
      _
    // Predicated region
    $region14: #{tpu_custom_call.1} parent=1 // pred_check
      _
    $region15: #{tpu_custom_call.1} parent=1 // pred_check_branch
      %47 = sbr.rel (0) target = $region17
    $region16: #{tpu_custom_call.1} parent=1 // pred_region
      %49 = dma.done [#allocation3], 128
    $region17: #{tpu_custom_call.1} parent=1 // pred_fallthru
      _
    // Predicated region
    $region18: #{tpu_custom_call.1} parent=1 // pred_check
      _
    $region19: #{tpu_custom_call.1} parent=1 // pred_check_branch
      %51 = sbr.rel (0) target = $region21
    $region20: #{tpu_custom_call.1} parent=1 // pred_region
      %53 = dma.done [#allocation6], 4608
    $region21: #{tpu_custom_call.1} parent=1 // pred_fallthru
      _
    // Predicated region
    $region22: #{tpu_custom_call.1} parent=1 // pred_check
      _
    $region23: #{tpu_custom_call.1} parent=1 // pred_check_branch
      %55 = sbr.rel (0) target = $region25
    $region24: #{tpu_custom_call.1} parent=1 // pred_region
      %57 = dma.done [#allocation6], 128
    $region25: #{tpu_custom_call.1} parent=1 // pred_fallthru
      _
    %v58 = vld [vmem:[#allocation2] sm:$0xff]
    %v59 = vld [vmem:[#allocation5] sm:$0xff]
    %v60 = vld [vmem:[#allocation5 + $0x8] sm:$0xff]
    %v61 = vld [vmem:[#allocation5 + $0x10] sm:$0xff]
    %v62 = vld [vmem:[#allocation5 + $0x18] sm:$0xff]
    %v63 = vld [vmem:[#allocation7] sm:$0x1]
    %v64 = vperm.slane %v63, 0
    %vm65 = vcmask 261120
    %v67 = vsel %vm65, %v58, 0
    %69 = vmatpush.msra.mxu0 0.0
    %70 = vmatpush.msra.mxu0 0.0
    %71 = vmatpush.msra.mxu0 0.0
    %72 = vmatpush.msra.mxu0 0.0
    %73 = vmatpush.msra.mxu0 0.0
    %74 = vmatpush.msra.mxu0 0.0
    %75 = vmatpush.msra.mxu0 0.0
    %76 = vmatpush.msra.mxu0 0.0
    %77 = vmatpush.msra.mxu0 0.0
    %78 = vmatpush.msra.mxu0 0.0
    %79 = vmatpush.msra.mxu0 0.0
    %80 = vmatpush.msra.mxu0 0.0
    %81 = vmatpush.msra.mxu0 %v62
    %82 = vmatpush.msra.mxu0 %v61
    %83 = vmatpush.msra.mxu0 %v60
    %84 = vmatpush.msra.mxu0 %v59
    %85 = vmatmul.f32.gmra.mxu0 %v67
    %v86 = vpop.f32.mrf.mxu0
    %v87 = vadd.f32 %v64, %v86
    %88 = vdwg.mxu0
    %v89 = vmax.f32 %v87, 0.0
    %v90 = vld [vmem:[#allocation5 + $0x20] sm:$0xff]
    %v91 = vld [vmem:[#allocation5 + $0x28] sm:$0xff]
    %v92 = vld [vmem:[#allocation5 + $0x30] sm:$0xff]
    %v93 = vld [vmem:[#allocation5 + $0x38] sm:$0xff]
    %v94 = vld [vmem:[#allocation5 + $0x40] sm:$0xff]
    %v95 = vld [vmem:[#allocation5 + $0x48] sm:$0xff]
    %v96 = vld [vmem:[#allocation5 + $0x50] sm:$0xff]
    %v97 = vld [vmem:[#allocation5 + $0x58] sm:$0xff]
    %v98 = vld [vmem:[#allocation5 + $0x60] sm:$0xff]
    %v99 = vld [vmem:[#allocation5 + $0x68] sm:$0xff]
    %v100 = vld [vmem:[#allocation5 + $0x70] sm:$0xff]
    %v101 = vld [vmem:[#allocation5 + $0x78] sm:$0xff]
    %v102 = vld [vmem:[#allocation5 + $0x80] sm:$0xff]
    %v103 = vld [vmem:[#allocation5 + $0x88] sm:$0xff]
    %v104 = vld [vmem:[#allocation5 + $0x90] sm:$0xff]
    %v105 = vld [vmem:[#allocation5 + $0x98] sm:$0xff]
    %v106 = vld [vmem:[#allocation7 + $0x1] sm:$0x1]
    %v107 = vperm.slane %v106, 0
    %108 = vmatpush.msra.mxu0 %v105
    %109 = vmatpush.msra.mxu0 %v104
    %110 = vmatpush.msra.mxu0 %v103
    %111 = vmatpush.msra.mxu0 %v102
    %112 = vmatpush.msra.mxu0 %v101
    %113 = vmatpush.msra.mxu0 %v100
    %114 = vmatpush.msra.mxu0 %v99
    %115 = vmatpush.msra.mxu0 %v98
    %116 = vmatpush.msra.mxu0 %v97
    %117 = vmatpush.msra.mxu0 %v96
    %118 = vmatpush.msra.mxu0 %v95
    %119 = vmatpush.msra.mxu0 %v94
    %120 = vmatpush.msra.mxu0 %v93
    %121 = vmatpush.msra.mxu0 %v92
    %122 = vmatpush.msra.mxu0 %v91
    %123 = vmatpush.msra.mxu0 %v90
    %124 = vmatmul.f32.gmra.mxu0 %v89
    %v125 = vpop.f32.mrf.mxu0
    %v126 = vadd.f32 %v107, %v125
    %127 = vdwg.mxu0
    %v128 = vmax.f32 %v126, 0.0
    %v129 = vld [vmem:[#allocation5 + $0xa0] sm:$0xff]
    %v130 = vld [vmem:[#allocation5 + $0xa8] sm:$0xff]
    %v131 = vld [vmem:[#allocation5 + $0xb0] sm:$0xff]
    %v132 = vld [vmem:[#allocation5 + $0xb8] sm:$0xff]
    %v133 = vld [vmem:[#allocation5 + $0xc0] sm:$0xff]
    %v134 = vld [vmem:[#allocation5 + $0xc8] sm:$0xff]
    %v135 = vld [vmem:[#allocation5 + $0xd0] sm:$0xff]
    %v136 = vld [vmem:[#allocation5 + $0xd8] sm:$0xff]
    %v137 = vld [vmem:[#allocation5 + $0xe0] sm:$0xff]
    %v138 = vld [vmem:[#allocation5 + $0xe8] sm:$0xff]
    %v139 = vld [vmem:[#allocation5 + $0xf0] sm:$0xff]
    %v140 = vld [vmem:[#allocation5 + $0xf8] sm:$0xff]
    %v141 = vld [vmem:[#allocation5 + $0x100] sm:$0xff]
    %v142 = vld [vmem:[#allocation5 + $0x108] sm:$0xff]
    %v143 = vld [vmem:[#allocation5 + $0x110] sm:$0xff]
    %v144 = vld [vmem:[#allocation5 + $0x118] sm:$0xff]
    %v145 = vld [vmem:[#allocation7 + $0x2] sm:$0x1]
    %v146 = vperm.slane %v145, 0
    %147 = vmatpush.msra.mxu0 %v144
    %148 = vmatpush.msra.mxu0 %v143
    %149 = vmatpush.msra.mxu0 %v142
    %150 = vmatpush.msra.mxu0 %v141
    %151 = vmatpush.msra.mxu0 %v140
    %152 = vmatpush.msra.mxu0 %v139
    %153 = vmatpush.msra.mxu0 %v138
    %154 = vmatpush.msra.mxu0 %v137
    %155 = vmatpush.msra.mxu0 %v136
    %156 = vmatpush.msra.mxu0 %v135
    %157 = vmatpush.msra.mxu0 %v134
    %158 = vmatpush.msra.mxu0 %v133
    %159 = vmatpush.msra.mxu0 %v132
    %160 = vmatpush.msra.mxu0 %v131
    %161 = vmatpush.msra.mxu0 %v130
    %162 = vmatpush.msra.mxu0 %v129
    %163 = vmatmul.f32.gmra.mxu0 %v128
    %v164 = vpop.f32.mrf.mxu0
    %v165 = vadd.f32 %v146, %v164
    %166 = vdwg.mxu0
    %167 = vst [vmem:[#allocation8] sm:$0xff] %v165
    // Predicated region
    $region26: #{tpu_custom_call.1} parent=1 // pred_check
      _
    $region27: #{tpu_custom_call.1} parent=1 // pred_check_branch
      %169 = sbr.rel (0) target = $region29
    $region28: #{tpu_custom_call.1} parent=1 // pred_region
      %171 = vsyncadd [#allocation4], 0
      %s173 = sshll.u32 [#allocation8], 4
      %s174 = int_to_ptr.vmem [resolvable:$true] %s173
      %s175 = sshll.u32 %s3, 4
      %s176 = int_to_ptr.hbm [resolvable:$true] %s175
      %178 = dma.vmem_to_hbm [thread:$0]  %s174, 128, %s176, [#allocation4]
    $region29: #{tpu_custom_call.1} parent=1 // pred_fallthru
      _
    // Predicated region
    $region30: #{tpu_custom_call.1} parent=1 // pred_check
      _
    $region31: #{tpu_custom_call.1} parent=1 // pred_check_branch
      %180 = sbr.rel (0) target = $region33
    $region32: #{tpu_custom_call.1} parent=1 // pred_region
      %182 = dma.done [#allocation4], 128
    $region33: #{tpu_custom_call.1} parent=1 // pred_fallthru
      _
    %183 = vsyncpa [#allocation3], 1
    %184 = vsyncpa [#allocation6], 1
    %185 = vsyncpa [#allocation4], 1

</llo_original>
